<compile_context>
chip_gen: v7x
topology: tpu7x:2x2x1
jax: 0.10.0
libtpu: 0.0.40
codegen_flags: <defaults>
</compile_context>

<pallas_src>
import functools

import jax
import jax.numpy as jnp
from jax import lax
from jax.experimental import pallas as pl
from jax.experimental.pallas import tpu as pltpu


def _round_up(x, m):
    return ((x + m - 1) // m) * m


def _patch_embed_kernel(x_ref, w_ref, p_ref, o_ref, *, inv_n, eps):
    """One token tile: conv-as-matmul + bias + LayerNorm over channels.

    x_ref : [TM, K]     bf16  token tile (pipelined over the grid)
    w_ref : [K, C_pad]  bf16  projection weight (VMEM-resident, single-buffered)
    p_ref : [3, C_pad]  f32   row 0 = conv bias, row 1 = gamma, row 2 = beta
    o_ref : [TM, C_pad] bf16 (or f32)
    """
    params = p_ref[...]
    # MXU matmul, f32 accumulation.
    y = jnp.dot(x_ref[...], w_ref[...], preferred_element_type=jnp.float32)
    y = y + params[0:1, :]                               # conv bias
    # LayerNorm over channels. Padded channels (zero weight columns + zero bias)
    # contribute exactly 0 to both sums, so dividing by the REAL channel count
    # (inv_n = 1/C_out) reproduces torch's statistics. Single-pass keeps the two
    # reductions independent; with f32 accumulation the E[y^2]-mean^2 cancellation
    # sits well inside the bf16-operand error budget (clamped at 0 as insurance).
    # TODO(synk): on v7x, if the VPU/XLU epilogue ever binds (3.2 TB/s HBM), push
    # these two reductions onto the MXU via jnp.dot(y, ones[(C_pad, 1)]).
    s = jnp.sum(y, axis=-1, keepdims=True)
    ss = jnp.sum(y * y, axis=-1, keepdims=True)
    mean = s * inv_n
    var = jnp.maximum(ss * inv_n - mean * mean, 0.0)
    inv_std = lax.rsqrt(var + eps)                        # EUP slot, effectively free
    o_ref[...] = ((y - mean) * inv_std * params[1:2, :]
                  + params[2:3, :]).astype(o_ref.dtype)


def patch_embedding(x, conv_w, conv_b, ln_gamma, ln_beta, patch_size, *,
                    eps=1e-5, out_dtype=jnp.bfloat16):
    """x: [B, C_in, H, W] (NCHW, like PyTorch). Returns [B, C_out, H/p, W/p]."""
    B, C_in, H, W = x.shape
    C_out = conv_w.shape[0]
    p = patch_size
    Hp, Wp = H // p, W // p
    M = B * Hp * Wp
    K = C_in * p * p

    # --- glue: non-overlapping patch extraction, flattened (ci, kh, kw)-major.
    # The [M, K] stream is NOT padded (no extra HBM pass); the bf16 cast fuses
    # with the transpose into one read+write of the input.
    patches = x.reshape(B, C_in, Hp, p, Wp, p)
    patches = patches.transpose(0, 2, 4, 1, 3, 5).reshape(M, K).astype(jnp.bfloat16)

    # Conv weight [C_out, C_in, p, p] -> [K, C_out] in the same (ci, kh, kw) order.
    # Only the (tiny) parameters get padded: C_out -> C_pad keeps the output
    # lane-dense (unmasked vst); K stays unpadded (block dim == full array dim).
    C_pad = _round_up(C_out, 128)
    w_mat = jnp.pad(conv_w.reshape(C_out, K).T.astype(jnp.bfloat16),
                    ((0, 0), (0, C_pad - C_out)))
    params = jnp.stack([conv_b, ln_gamma, ln_beta]).astype(jnp.float32)  # [3, C_out]
    params = jnp.pad(params, ((0, 0), (0, C_pad - C_out)))

    # Token tile: guarantee >= 2 grid steps so v7x's two TensorCores both get work;
    # cap at 512 (>=85% of HBM roofline; 2 in-bufs + 2 out-bufs + resident weight
    # fits the scoped-VMEM defaults: 16 MiB on v5e, 32 MiB on v6e/v7x, so no
    # vmem_limit_bytes override is needed). Partial last block is clipped by Pallas.
    TM = max(8, min(512, _round_up(pl.cdiv(M, 2), 8)))
    grid = (pl.cdiv(M, TM),)

    kernel = functools.partial(_patch_embed_kernel, inv_n=1.0 / C_out, eps=eps)
    out_itemsize = jnp.dtype(out_dtype).itemsize
    cost = pl.CostEstimate(
        flops=2 * M * K * C_pad,
        transcendentals=M,  # one rsqrt per token
        bytes_accessed=(M * K * 2 + K * C_pad * 2
                        + M * C_pad * out_itemsize + 3 * C_pad * 4),
    )

    out = pl.pallas_call(
        kernel,
        out_shape=jax.ShapeDtypeStruct((M, C_pad), out_dtype),
        grid=grid,
        in_specs=[
            pl.BlockSpec((TM, K), lambda i: (i, 0)),           # token tile, pipelined
            pl.BlockSpec((K, C_pad), lambda i: (0, 0),
                         pipeline_mode=pl.Buffered(1)),        # resident weight
            pl.BlockSpec((3, C_pad), lambda i: (0, 0),
                         pipeline_mode=pl.Buffered(1)),        # bias/gamma/beta pack
        ],
        out_specs=pl.BlockSpec((TM, C_pad), lambda i: (i, 0)),
        compiler_params=pltpu.CompilerParams(
            dimension_semantics=("parallel",)),                # shard M over TCs
        cost_estimate=cost,
    )(patches, w_mat, params)

    out = out[:, :C_out]
    # --- glue: tokens [M, C_out] -> NCHW (matches the torch module's .view).
    # TODO(synk): transformer consumers should take the tokens-major [B, Hp*Wp, C_out]
    # output directly (optionally C_pad-padded) and skip this extra HBM pass.
    out = out.reshape(B, Hp * Wp, C_out).transpose(0, 2, 1).reshape(B, C_out, Hp, Wp)
    return out


def _reference(x, conv_w, conv_b, ln_gamma, ln_beta, p, eps=1e-5):
    """Pure-JAX f32 reference matching the PyTorch module."""
    B, C_in, H, W = x.shape
    C_out = conv_w.shape[0]
    Hp, Wp = H // p, W // p
    patches = x.reshape(B, C_in, Hp, p, Wp, p).transpose(0, 2, 4, 1, 3, 5)
    patches = patches.reshape(B * Hp * Wp, C_in * p * p)
    y = patches @ conv_w.reshape(C_out, -1).T + conv_b
    mean = y.mean(-1, keepdims=True)
    var = ((y - mean) ** 2).mean(-1, keepdims=True)
    y = (y - mean) / jnp.sqrt(var + eps) * ln_gamma + ln_beta
    return y.reshape(B, Hp * Wp, C_out).transpose(0, 2, 1).reshape(B, C_out, Hp, Wp)


if __name__ == "__main__":
    # Small shapes consistent with the module: B=2, C_in=4, H=W=16, patch=4, C_out=32
    B, C_in, H, W = 2, 4, 16, 16
    C_out, patch = 32, 4

    key = jax.random.PRNGKey(0)
    kx, kw, kb, kg, kbeta = jax.random.split(key, 5)

    x = jax.random.normal(kx, (B, C_in, H, W), dtype=jnp.float32)

    # Deterministic synthetic parameters (shapes per nn.Conv2d / nn.LayerNorm)
    fan_in = C_in * patch * patch
    bound = 1.0 / (fan_in ** 0.5)
    conv_w = jax.random.uniform(kw, (C_out, C_in, patch, patch),
                                minval=-bound, maxval=bound, dtype=jnp.float32)
    conv_b = jax.random.uniform(kb, (C_out,), minval=-bound, maxval=bound,
                                dtype=jnp.float32)
    ln_gamma = jnp.ones((C_out,), jnp.float32) + 0.1 * jax.random.normal(kg, (C_out,))
    ln_beta = 0.1 * jax.random.normal(kbeta, (C_out,))

    y = patch_embedding(x, conv_w, conv_b, ln_gamma, ln_beta, patch)
    jax.block_until_ready(y)
    assert y.shape == (B, C_out, H // patch, W // patch)

    # Sanity check vs f32 reference (loose tolerance: bf16 matmul operands + bf16 out).
    y_ref = _reference(x, conv_w, conv_b, ln_gamma, ln_beta, patch)
    max_err = float(jnp.max(jnp.abs(y.astype(jnp.float32) - y_ref)))
    assert max_err < 1e-1, f"max abs err {max_err}"
    print("KERNEL_OK")
</pallas_src>

<mosaic_0001>
module attributes {stable_mosaic.version = 11 : i64} {
  func.func @_patch_embed_kernel(%arg0: i32, %arg1: memref<16x64xbf16, #tpu.memory_space<vmem>>, %arg2: memref<64x128xbf16, #tpu.memory_space<vmem>>, %arg3: memref<3x128xf32, #tpu.memory_space<vmem>>, %arg4: memref<16x128xbf16, #tpu.memory_space<vmem>>) attributes {dimension_semantics = [#tpu.dimension_semantics<parallel>], iteration_bounds = array<i64: 2>, scalar_prefetch = 0 : i64, scratch_operands = 0 : i64, tpu.core_type = #tpu.core_type<tc>, window_params = [{transform_indices = @transform_0, window_bounds = array<i64: 16, 64>}, {pipeline_mode = #tpu.pipeline_mode<synchronous>, transform_indices = @transform_1, window_bounds = array<i64: 64, 128>}, {pipeline_mode = #tpu.pipeline_mode<synchronous>, transform_indices = @transform_2, window_bounds = array<i64: 3, 128>}, {transform_indices = @transform_3, window_bounds = array<i64: 16, 128>}]} {
    %c0 = arith.constant 0 : index
    %c0_0 = arith.constant 0 : index
    %0 = vector.load %arg3[%c0, %c0_0] : memref<3x128xf32, #tpu.memory_space<vmem>>, vector<3x128xf32>
    %c0_1 = arith.constant 0 : index
    %c0_2 = arith.constant 0 : index
    %1 = vector.load %arg1[%c0_1, %c0_2] : memref<16x64xbf16, #tpu.memory_space<vmem>>, vector<16x64xbf16>
    %c0_3 = arith.constant 0 : index
    %c0_4 = arith.constant 0 : index
    %2 = vector.load %arg2[%c0_3, %c0_4] : memref<64x128xbf16, #tpu.memory_space<vmem>>, vector<64x128xbf16>
    %cst = arith.constant dense<0.000000e+00> : vector<16x128xf32>
    %3 = tpu.matmul %1, %2, %cst {dimension_numbers = #tpu.dot_dimension_numbers<[1], [0], [0], [1], [0, 0, 1, 1], [], []>} : vector<16x64xbf16>, vector<64x128xbf16>, vector<16x128xf32> -> vector<16x128xf32>
    %4 = vector.extract_strided_slice %0 {offsets = [0, 0], sizes = [1, 128], strides = [1, 1]} : vector<3x128xf32> to vector<1x128xf32>
    %5 = vector.broadcast %4 : vector<1x128xf32> to vector<16x128xf32>
    %6 = arith.addf %3, %5 : vector<16x128xf32>
    %cst_5 = arith.constant dense<0.000000e+00> : vector<16xf32>
    %7 = vector.multi_reduction <add>, %6, %cst_5 [1] : vector<16x128xf32> to vector<16xf32>
    %8 = vector.shape_cast %7 : vector<16xf32> to vector<16x1xf32>
    %9 = arith.mulf %6, %6 : vector<16x128xf32>
    %cst_6 = arith.constant dense<0.000000e+00> : vector<16xf32>
    %10 = vector.multi_reduction <add>, %9, %cst_6 [1] : vector<16x128xf32> to vector<16xf32>
    %11 = vector.shape_cast %10 : vector<16xf32> to vector<16x1xf32>
    %cst_7 = arith.constant 3.125000e-02 : f32
    %12 = vector.broadcast %cst_7 : f32 to vector<16x1xf32>
    %13 = arith.mulf %8, %12 : vector<16x1xf32>
    %cst_8 = arith.constant 3.125000e-02 : f32
    %14 = vector.broadcast %cst_8 : f32 to vector<16x1xf32>
    %15 = arith.mulf %11, %14 : vector<16x1xf32>
    %16 = arith.mulf %13, %13 : vector<16x1xf32>
    %17 = arith.subf %15, %16 : vector<16x1xf32>
    %cst_9 = arith.constant 0.000000e+00 : f32
    %18 = vector.broadcast %cst_9 : f32 to vector<16x1xf32>
    %19 = arith.maximumf %17, %18 : vector<16x1xf32>
    %cst_10 = arith.constant 9.99999974E-6 : f32
    %20 = vector.broadcast %cst_10 : f32 to vector<16x1xf32>
    %21 = arith.addf %19, %20 : vector<16x1xf32>
    %22 = math.rsqrt %21 : vector<16x1xf32>
    %23 = vector.broadcast %13 : vector<16x1xf32> to vector<16x128xf32>
    %24 = arith.subf %6, %23 : vector<16x128xf32>
    %25 = vector.broadcast %22 : vector<16x1xf32> to vector<16x128xf32>
    %26 = arith.mulf %24, %25 : vector<16x128xf32>
    %27 = vector.extract_strided_slice %0 {offsets = [1, 0], sizes = [1, 128], strides = [1, 1]} : vector<3x128xf32> to vector<1x128xf32>
    %28 = vector.broadcast %27 : vector<1x128xf32> to vector<16x128xf32>
    %29 = arith.mulf %26, %28 : vector<16x128xf32>
    %30 = vector.extract_strided_slice %0 {offsets = [2, 0], sizes = [1, 128], strides = [1, 1]} : vector<3x128xf32> to vector<1x128xf32>
    %31 = vector.broadcast %30 : vector<1x128xf32> to vector<16x128xf32>
    %32 = arith.addf %29, %31 : vector<16x128xf32>
    %33 = arith.truncf %32 : vector<16x128xf32> to vector<16x128xbf16>
    %c0_11 = arith.constant 0 : index
    %c0_12 = arith.constant 0 : index
    %34 = vector.load %arg4[%c0_11, %c0_12] : memref<16x128xbf16, #tpu.memory_space<vmem>>, vector<16x128xbf16>
    tpu.vector_store %arg4[%c0_11, %c0_12], %33 {strides = array<i32>} : memref<16x128xbf16, #tpu.memory_space<vmem>>, vector<16x128xbf16>,
    return
  }
  func.func @transform_0(%arg0: i32) -> (i32, i32) {
    %c0_i32 = arith.constant 0 : i32
    %c0_i32_0 = arith.constant 0 : i32
    return %arg0, %c0_i32 : i32, i32
  }
  func.func @transform_1(%arg0: i32) -> (i32, i32) {
    %c0_i32 = arith.constant 0 : i32
    %c0_i32_0 = arith.constant 0 : i32
    %c0_i32_1 = arith.constant 0 : i32
    return %c0_i32, %c0_i32_0 : i32, i32
  }
  func.func @transform_2(%arg0: i32) -> (i32, i32) {
    %c0_i32 = arith.constant 0 : i32
    %c0_i32_0 = arith.constant 0 : i32
    %c0_i32_1 = arith.constant 0 : i32
    return %c0_i32, %c0_i32_0 : i32, i32
  }
  func.func @transform_3(%arg0: i32) -> (i32, i32) {
    %c0_i32 = arith.constant 0 : i32
    %c0_i32_0 = arith.constant 0 : i32
    return %arg0, %c0_i32 : i32, i32
  }
}

</mosaic_0001>

<llo_original>
// kernel: tpu_custom_call.1
$region0: #{tpu_custom_call.1}
  #allocation0 [shape = 'u32[]', space=smem, size = 0x4, offset = 0x4, fixed_abs, tag = 'smem constant byte address 0x4 - core index']
  #allocation1 [shape = 'u32[144,128]{1,0:T(1,128)}', space=vmem, size = 0x12000, scoped, tag = 'internal scratch']
  %s0 = inlined_call_operand.hbm [shape: bf16[32,64], index: 0, kind: input, shape index: {}]
  %s1 = inlined_call_operand.hbm [shape: bf16[64,128], index: 1, kind: input, shape index: {}]
  %s2 = inlined_call_operand.vmem [shape: f32[3,128], index: 2, kind: input, shape index: {}]
  %s3 = inlined_call_operand.hbm [shape: bf16[32,128], index: 3, kind: output, shape index: {}]
  %s4 = sld [smem:[#allocation0]]
  $region53: #{tpu_custom_call.1} parent=0
    _
  %s6 = ssub.s32 1, %s4
  %s7 = scalar_select 0, %s6, %s4
  $region1: #{tpu_custom_call.1} parent=0
    #allocation2 [shape = 'u8[8192]{0}', space=vmem, size = 0x2000, scoped, tag = 'input window, operand 0']
    #allocation3 [shape = 's32[2]{0}', space=sflag, size = 0x8, scoped, tag = 'scoped memory for tpu_custom_call.1']
    #allocation4 [shape = 's32[2]{0}', space=sflag, size = 0x8, scoped, tag = 'scoped memory for tpu_custom_call.1']
    #allocation5 [shape = 'u8[16384]{0}', space=vmem, size = 0x4000, scoped, tag = 'input window, operand 1, single buffered']
    #allocation6 [shape = 's32[1]{0}', space=sflag, size = 0x4, scoped, tag = 'scoped memory for tpu_custom_call.1']
    #allocation7 [shape = 'u8[8192]{0}', space=vmem, size = 0x2000, scoped, tag = 'output window, operand 0']
    %8 = vsyncpa [#allocation3], 0
    %s9 = scalar_lea.sflag [#allocation3], 1
    %10 = vsyncpa %s9, 0
    %11 = vsyncpa [#allocation6], 0
    %12 = vsyncpa [#allocation4], 0
    %s13 = scalar_lea.sflag [#allocation4], 1
    %14 = vsyncpa %s13, 0
    loop: start=0, step=1, limit=4
    $region2: #{tpu_custom_call.1} parent=1 // loop_pre_header
      _
    $region3: #{tpu_custom_call.1} parent=1 // loop_header
      %s16 = sphi 0, %s20
      %p17 = scmp.ge.s32.totalorder %s16, 4
      %s26 = sphi 0, %s28
      %s29 = sphi 0, %s26
      %s30 = sphi 0, %s29
      %s46 = sphi 0, %s30
      %s50 = sphi 0, %s50
      %s52 = sphi 0, %s50
      %s53 = sphi 0, %s52
      %s67 = sphi 0, %s53
      %s71 = sphi 0, %s71
      %s73 = sphi 0, %s71
      %s74 = sphi 0, %s73
      %s88 = sphi 0, %s74
      %s94 = sphi 0, %s96
      %s97 = sphi 0, %s94
      %s98 = sphi 0, %s97
      %s114 = sphi 0, %s98
    $region4: #{tpu_custom_call.1} parent=1 // loop_header_branch
      %19 = sbr.rel (%p17) target = $region8
    $region5: #{tpu_custom_call.1} parent=1 // loop_body
      %s21 = ssub.s32 %s16, 1
      %s22 = ssub.s32 %s16, 2
      %s23 = sadd.s32 %s16, 1
      %s24 = ssub.s32 %s16, %s23
      %p25 = scmp.eq.s32.totalorder %s24, 0
      %s27 = sadd.s32 %s26, 1
      %s28 = scalar_select %p25, %s26, %s27
      %p31 = pneg %p25
      %p32 = scmp.eq.s32.totalorder %s16, 1
      %p33 = por %p31, %p32
      %p34 = scmp.ne.s32.totalorder %s26, %s29
      %p35 = scmp.eq.s32.totalorder %s16, 0
      %p36 = por %p34, %p35
      %p37 = scmp.ne.s32.totalorder %s26, %s29
      %p38 = scmp.eq.s32.totalorder %s21, 1
      %p39 = por %p37, %p38
      %p40 = scmp.ne.s32.totalorder %s29, %s30
      %p41 = scmp.eq.s32.totalorder %s21, 0
      %p42 = por %p40, %p41
      %p43 = scmp.ne.s32.totalorder %s29, %s30
      %p44 = scmp.eq.s32.totalorder %s22, 1
      %p45 = por %p43, %p44
      %p47 = scmp.ne.s32.totalorder %s30, %s46
      %p48 = scmp.eq.s32.totalorder %s22, 0
      %p49 = por %p47, %p48
      %s51 = sadd.s32 %s50, 1
      %p54 = scmp.eq.s32.totalorder %s16, 1
      %p55 = scmp.ne.s32.totalorder %s50, %s52
      %p56 = scmp.eq.s32.totalorder %s16, 0
      %p57 = por %p55, %p56
      %p58 = scmp.ne.s32.totalorder %s50, %s52
      %p59 = scmp.eq.s32.totalorder %s21, 1
      %p60 = por %p58, %p59
      %p61 = scmp.ne.s32.totalorder %s52, %s53
      %p62 = scmp.eq.s32.totalorder %s21, 0
      %p63 = por %p61, %p62
      %p64 = scmp.ne.s32.totalorder %s52, %s53
      %p65 = scmp.eq.s32.totalorder %s22, 1
      %p66 = por %p64, %p65
      %p68 = scmp.ne.s32.totalorder %s53, %s67
      %p69 = scmp.eq.s32.totalorder %s22, 0
      %p70 = por %p68, %p69
      %s72 = sadd.s32 %s71, 1
      %p75 = scmp.eq.s32.totalorder %s16, 1
      %p76 = scmp.ne.s32.totalorder %s71, %s73
      %p77 = scmp.eq.s32.totalorder %s16, 0
      %p78 = por %p76, %p77
      %p79 = scmp.ne.s32.totalorder %s71, %s73
      %p80 = scmp.eq.s32.totalorder %s21, 1
      %p81 = por %p79, %p80
      %p82 = scmp.ne.s32.totalorder %s73, %s74
      %p83 = scmp.eq.s32.totalorder %s21, 0
      %p84 = por %p82, %p83
      %p85 = scmp.ne.s32.totalorder %s73, %s74
      %p86 = scmp.eq.s32.totalorder %s22, 1
      %p87 = por %p85, %p86
      %p89 = scmp.ne.s32.totalorder %s74, %s88
      %p90 = scmp.eq.s32.totalorder %s22, 0
      %p91 = por %p89, %p90
      %s92 = ssub.s32 %s16, %s23
      %p93 = scmp.eq.s32.totalorder %s92, 0
      %s95 = sadd.s32 %s94, 1
      %s96 = scalar_select %p93, %s94, %s95
      %p99 = pneg %p93
      %p100 = scmp.eq.s32.totalorder %s16, 1
      %p101 = por %p99, %p100
      %p102 = scmp.ne.s32.totalorder %s94, %s97
      %p103 = scmp.eq.s32.totalorder %s16, 0
      %p104 = por %p102, %p103
      %p105 = scmp.ne.s32.totalorder %s94, %s97
      %p106 = scmp.eq.s32.totalorder %s21, 1
      %p107 = por %p105, %p106
      %p108 = scmp.ne.s32.totalorder %s97, %s98
      %p109 = scmp.eq.s32.totalorder %s21, 0
      %p110 = por %p108, %p109
      %p111 = scmp.ne.s32.totalorder %s97, %s98
      %p112 = scmp.eq.s32.totalorder %s22, 1
      %p113 = por %p111, %p112
      %p115 = scmp.ne.s32.totalorder %s98, %s114
      %p116 = scmp.eq.s32.totalorder %s22, 0
      %p117 = por %p115, %p116
      %p118 = scmp.le.s32.totalorder 1, %s16
      %p119 = scmp.lt.s32.totalorder %s16, 3
      %p120 = pnand %p118, %p119
      %p121 = pneg %p120
      // Predicated region
      $region9: #{tpu_custom_call.1} parent=5 // pred_check
        _
      $region10: #{tpu_custom_call.1} parent=5 // pred_check_branch
        %123 = sbr.rel (%p120) target = $region12
      $region11: #{tpu_custom_call.1} parent=5 // pred_region
        %s124 = ssub.s32 %s16, 1
        // Predicated region
        $region13: #{tpu_custom_call.1} parent=11 // pred_check
          %p125 = pneg %p63
        $region14: #{tpu_custom_call.1} parent=11 // pred_check_branch
          %127 = sbr.rel (%p125) target = $region16
        $region15: #{tpu_custom_call.1} parent=11 // pred_region
          %s129 = ssub.s32 512, 512
          %130 = vsyncadd [#allocation6], %s129
          %s131 = sshll.u32 [#allocation5], 4
          %s132 = int_to_ptr.vmem [resolvable:$true] %s131
          %137 = dma.hbm_to_vmem [thread:$0]  %s1, 512, %s132, [#allocation6], 64, 64, 4
        $region16: #{tpu_custom_call.1} parent=11 // pred_fallthru
          _
        // Predicated region
        $region17: #{tpu_custom_call.1} parent=11 // pred_check
          %p138 = pneg %p84
        $region18: #{tpu_custom_call.1} parent=11 // pred_check_branch
          %140 = sbr.rel (%p138) target = $region20
        $region19: #{tpu_custom_call.1} parent=11 // pred_region
          _
        $region20: #{tpu_custom_call.1} parent=11 // pred_fallthru
          _
      $region12: #{tpu_custom_call.1} parent=5 // pred_fallthru
        _
      %p141 = scmp.lt.s32.totalorder %s16, 2
      // Predicated region
      $region21: #{tpu_custom_call.1} parent=5 // pred_check
        %p142 = pneg %p141
      $region22: #{tpu_custom_call.1} parent=5 // pred_check_branch
        %144 = sbr.rel (%p142) target = $region24
      $region23: #{tpu_custom_call.1} parent=5 // pred_region
        // Predicated region
        $region25: #{tpu_custom_call.1} parent=23 // pred_check
          %p145 = pneg %p36
        $region26: #{tpu_custom_call.1} parent=23 // pred_check_branch
          %147 = sbr.rel (%p145) target = $region28
        $region27: #{tpu_custom_call.1} parent=23 // pred_region
          %s148 = sand.u32 %s26, 1
          %s149 = scalar_lea.sflag [#allocation3], %s148
          %s150 = sand.u32 %s26, 1
          %s151 = smul.addr %s150, 8
          %s152 = scalar_lea.vmem [#allocation2], %s151
          %s153 = smul.u32 2, %s16
          %s155 = ssub.s32 128, 128
          %156 = vsyncadd %s149, %s155
          %s157 = smul.addr %s153, 64
          %s158 = scalar_lea.hbm %s0, %s157
          %s159 = sshll.u32 %s152, 4
          %s160 = int_to_ptr.vmem [resolvable:$true] %s159
          %165 = dma.hbm_to_vmem [thread:$0]  %s158, 128, %s160, %s149, 64, 64, 4
        $region28: #{tpu_custom_call.1} parent=23 // pred_fallthru
          _
      $region24: #{tpu_custom_call.1} parent=5 // pred_fallthru
        _
      %p166 = scmp.le.s32.totalorder 1, %s16
      %p167 = scmp.lt.s32.totalorder %s16, 3
      %p168 = pnand %p166, %p167
      %p169 = pneg %p168
      // Predicated region
      $region29: #{tpu_custom_call.1} parent=5 // pred_check
        _
      $region30: #{tpu_custom_call.1} parent=5 // pred_check_branch
        %171 = sbr.rel (%p168) target = $region32
      $region31: #{tpu_custom_call.1} parent=5 // pred_region
        %s172 = ssub.s32 %s16, 1
        %s173 = sand.u32 %s29, 1
        %s174 = scalar_lea.sflag [#allocation3], %s173
        %s175 = sand.u32 %s29, 1
        %s176 = smul.addr %s175, 8
        %s177 = scalar_lea.vmem [#allocation2], %s176
        // Predicated region
        $region33: #{tpu_custom_call.1} parent=31 // pred_check
          %p178 = pneg %p42
        $region34: #{tpu_custom_call.1} parent=31 // pred_check_branch
          %180 = sbr.rel (%p178) target = $region36
        $region35: #{tpu_custom_call.1} parent=31 // pred_region
          %181 = dma.done %s174, 128
        $region36: #{tpu_custom_call.1} parent=31 // pred_fallthru
          _
        // Predicated region
        $region37: #{tpu_custom_call.1} parent=31 // pred_check
          %p182 = pneg %p63
        $region38: #{tpu_custom_call.1} parent=31 // pred_check_branch
          %184 = sbr.rel (%p182) target = $region40
        $region39: #{tpu_custom_call.1} parent=31 // pred_region
          %185 = dma.done [#allocation6], 512
        $region40: #{tpu_custom_call.1} parent=31 // pred_fallthru
          _
        %s186 = sand.u32 %s29, 1
        %s187 = scalar_lea.sflag [#allocation3], %s186
        %s188 = sand.u32 %s29, 1
        %s189 = smul.addr %s188, 8
        %s190 = scalar_lea.vmem [#allocation2], %s189
        %p191 = pneg %p42
        %p192 = pneg %p39
        %p193 = pneg %p63
        %p194 = pneg %p60
        %p195 = pneg %p84
        %p196 = pneg %p81
        %p197 = pneg %p110
        %p198 = pneg %p107
        %s199 = sand.u32 %s97, 1
        %s200 = scalar_lea.sflag [#allocation4], %s199
        %s201 = sand.u32 %s97, 1
        %s202 = smul.addr %s201, 8
        %s203 = scalar_lea.vmem [#allocation7], %s202
        %s204 = smul.u32 2, %s21
        %s205 = smul.u32 2, %s21
        %v207 = vld [vmem:[%s2] sm:$0x7]
        %v208 = vld [vmem:[%s177] sm:$0xf]
        %v209 = vld [vmem:[%s177 + $0x4] sm:$0xf]
        %v210 = vld [vmem:[#allocation5] sm:$0xf]
        %v211 = vld [vmem:[#allocation5 + $0x4] sm:$0xf]
        %v212 = vld [vmem:[#allocation5 + $0x8] sm:$0xf]
        %v213 = vld [vmem:[#allocation5 + $0xc] sm:$0xf]
        %v214 = vld [vmem:[#allocation5 + $0x10] sm:$0xf]
        %v215 = vld [vmem:[#allocation5 + $0x14] sm:$0xf]
        %v216 = vld [vmem:[#allocation5 + $0x18] sm:$0xf]
        %v217 = vld [vmem:[#allocation5 + $0x1c] sm:$0xf]
        %v218 = vlaneseq
        %v219 = vshrl.u32 %v218, 7
        %v220 = vsub.s32 0, %v219
        %v221 = vrot.slane %v207, %v220
        %v224 = vunpack.c.l.b16 %v208
        %v225 = vunpack.c.l.b16 %v209
        %v226 = vpack.c.b16 %v225, %v224
        %v235 = vunpack.c.l.b16 %v210
        %v236 = vunpack.c.l.b16 %v211
        %v237 = vunpack.c.l.b16 %v212
        %v238 = vunpack.c.l.b16 %v213
        %v239 = vunpack.c.l.b16 %v214
        %v240 = vunpack.c.l.b16 %v215
        %v241 = vunpack.c.l.b16 %v216
        %v242 = vunpack.c.l.b16 %v217
        %v243 = vpack.c.b16 %v236, %v235
        %v244 = vpack.c.b16 %v238, %v237
        %v245 = vpack.c.b16 %v240, %v239
        %v246 = vpack.c.b16 %v242, %v241
        %vm251 = vcmask 523264
        %v253 = vsel %vm251, %v226, 0
        %255 = vmatprep.subr.bf16.mxu0 0
        %256 = vmatpush1.bf16.msra.mxu0 %v243
        %257 = vmatprep.subr.bf16.mxu0 0
        %258 = vmatpush1.bf16.msra.mxu0 %v244
        %259 = vmatprep.subr.bf16.mxu0 0
        %260 = vmatpush1.bf16.msra.mxu0 %v245
        %261 = vmatprep.subr.bf16.mxu0 0
        %262 = vmatpush1.bf16.msra.mxu0 %v246
        %263 = vmatprep.subr.bf16.mxu0 0
        %264 = vmatpush1.bf16.msra.mxu0 0
        %265 = vmatprep.subr.bf16.mxu0 0
        %266 = vmatpush1.bf16.msra.mxu0 0
        %267 = vmatprep.subr.bf16.mxu0 0
        %268 = vmatpush1.bf16.msra.mxu0 0
        %269 = vmatprep.subr.bf16.mxu0 0
        %270 = vmatpush1.bf16.msra.mxu0 0
        %271 = vmatprep.subr.bf16.mxu0 0
        %272 = vmatpush1.bf16.msra.mxu0 0
        %273 = vmatprep.subr.bf16.mxu0 0
        %274 = vmatpush1.bf16.msra.mxu0 0
        %275 = vmatprep.subr.bf16.mxu0 0
        %276 = vmatpush1.bf16.msra.mxu0 0
        %277 = vmatprep.subr.bf16.mxu0 0
        %278 = vmatpush1.bf16.msra.mxu0 0
        %279 = vmatprep.subr.bf16.mxu0 0
        %280 = vmatpush1.bf16.msra.mxu0 0
        %281 = vmatprep.subr.bf16.mxu0 0
        %282 = vmatpush1.bf16.msra.mxu0 0
        %283 = vmatprep.subr.bf16.mxu0 0
        %284 = vmatpush1.bf16.msra.mxu0 0
        %285 = vmatprep.subr.bf16.mxu0 0
        %286 = vmatpush1.bf16.msra.mxu0 0
        %287 = vmatprep.mubr.bf16.mxu0 0
        %288 = vmatmul.mubr.bf16.gmra.mrb[0].mxu0 %v253
        %v289 = vpop.f32.mrb[0].mxu0
        %v290 = vadd.f32 %v221, %v289
        %v291 = vpop.f32.mrb[0].mxu0
        %v292 = vpop.f32.mrb[0].mxu0
        %v293 = vadd.f32 %v221, %v292
        %v294 = vpop.f32.mrb[0].mxu0
        %295 = vdwg.mxu0
        %296 = vadd.xlane.f32.xlu0 %v290
        %v297 = vpop.xlane.xlu0 %296
        %298 = vadd.xlane.f32.xlu0 %v293
        %v299 = vpop.xlane.xlu0 %298
        %v300 = vmul.f32 %v290, %v290
        %v301 = vmul.f32 %v293, %v293
        %302 = vadd.xlane.f32.xlu0 %v300
        %v303 = vpop.xlane.xlu0 %302
        %304 = vadd.xlane.f32.xlu0 %v301
        %v305 = vpop.xlane.xlu0 %304
        %v306 = vmul.f32 %v297, 0.03125
        %v307 = vmul.f32 %v299, 0.03125
        %v308 = vmul.f32 %v303, 0.03125
        %v309 = vmul.f32 %v305, 0.03125
        %v310 = vmul.f32 %v306, %v306
        %v311 = vmul.f32 %v307, %v307
        %v312 = vsub.f32 %v308, %v310
        %v313 = vsub.f32 %v309, %v311
        %v314 = vmax.f32 %v312, 0.0
        %v315 = vmax.f32 %v313, 0.0
        %v316 = vadd.f32 %v314, 1e-05
        %v317 = vadd.f32 %v315, 1e-05
        %v318 = vrsqrt.pop %v316
        %v319 = vrsqrt.pop %v317
        %v320 = vsub.f32 %v290, %v306
        %v321 = vsub.f32 %v293, %v307
        %v322 = vmul.f32 %v320, %v318
        %v323 = vmul.f32 %v321, %v319
        %v324 = vlaneseq
        %v325 = vshrl.u32 %v324, 7
        %v326 = vsub.s32 1, %v325
        %v327 = vrot.slane %v207, %v326
        %v328 = vmul.f32 %v322, %v327
        %v329 = vmul.f32 %v323, %v327
        %v330 = vlaneseq
        %v331 = vshrl.u32 %v330, 7
        %v332 = vsub.s32 2, %v331
        %v333 = vrot.slane %v207, %v332
        %v334 = vadd.f32 %v328, %v333
        %v335 = vadd.f32 %v329, %v333
        %v336 = vpack.c.bf16 %v335, %v334
        %v338 = vunpack.c.l.b16 %v336
        %v339 = vunpack.c.h.b16 %v336
        %v340 = vpack.c.b16 %v338, %v338
        %v341 = vpack.c.b16 %v339, %v339
        %344 = vst [vmem:[%s203] sm:$0xf] %v340
        %345 = vst [vmem:[%s203 + $0x4] sm:$0xf] %v341
        %s346 = sand.u32 %s97, 1
        %s347 = scalar_lea.sflag [#allocation4], %s346
        %s348 = sand.u32 %s97, 1
        %s349 = smul.addr %s348, 8
        %s350 = scalar_lea.vmem [#allocation7], %s349
        // Predicated region
        $region41: #{tpu_custom_call.1} parent=31 // pred_check
          %p351 = pneg %p107
        $region42: #{tpu_custom_call.1} parent=31 // pred_check_branch
          %353 = sbr.rel (%p351) target = $region44
        $region43: #{tpu_custom_call.1} parent=31 // pred_region
          %s354 = smul.u32 2, %s21
          %s356 = ssub.s32 128, 128
          %357 = vsyncadd %s347, %s356
          %s358 = smul.addr %s354, 64
          %s359 = scalar_lea.hbm %s3, %s358
          %s360 = sshll.u32 %s350, 4
          %s361 = int_to_ptr.vmem [resolvable:$true] %s360
          %366 = dma.vmem_to_hbm [thread:$0]  %s361, 128, %s359, %s347, 64, 64, 4
        $region44: #{tpu_custom_call.1} parent=31 // pred_fallthru
          _
      $region32: #{tpu_custom_call.1} parent=5 // pred_fallthru
        _
      %p367 = scmp.le.s32.totalorder 2, %s16
      // Predicated region
      $region45: #{tpu_custom_call.1} parent=5 // pred_check
        %p368 = pneg %p367
      $region46: #{tpu_custom_call.1} parent=5 // pred_check_branch
        %370 = sbr.rel (%p368) target = $region48
      $region47: #{tpu_custom_call.1} parent=5 // pred_region
        %s371 = ssub.s32 %s16, 2
        // Predicated region
        $region49: #{tpu_custom_call.1} parent=47 // pred_check
          %p372 = pneg %p113
        $region50: #{tpu_custom_call.1} parent=47 // pred_check_branch
          %374 = sbr.rel (%p372) target = $region52
        $region51: #{tpu_custom_call.1} parent=47 // pred_region
          %s375 = sand.u32 %s98, 1
          %s376 = scalar_lea.sflag [#allocation4], %s375
          %s377 = sand.u32 %s98, 1
          %s378 = smul.addr %s377, 8
          %s379 = scalar_lea.vmem [#allocation7], %s378
          %380 = dma.done %s376, 128
        $region52: #{tpu_custom_call.1} parent=47 // pred_fallthru
          _
      $region48: #{tpu_custom_call.1} parent=5 // pred_fallthru
        _
    $region6: #{tpu_custom_call.1} parent=1 // loop_footer
      %s20 = sadd.s32 1, %s16
    $region7: #{tpu_custom_call.1} parent=1 // loop_footer_branch
      %15 = sbr.rel target = $region3
    $region8: #{tpu_custom_call.1} parent=1 // loop_exit
      _
    %381 = vsyncpa [#allocation3], 1
    %s382 = scalar_lea.sflag [#allocation3], 1
    %383 = vsyncpa %s382, 1
    %384 = vsyncpa [#allocation6], 1
    %385 = vsyncpa [#allocation4], 1
    %s386 = scalar_lea.sflag [#allocation4], 1
    %387 = vsyncpa %s386, 1

</llo_original>
